<compile_context>
chip_gen: v5e
topology: v5e:2x2
jax: 0.10.0
libtpu: 0.0.40
codegen_flags: <defaults>
</compile_context>

<pallas_src>
import functools
import math

import jax
import jax.numpy as jnp
from jax.experimental import pallas as pl
from jax.experimental.pallas import tpu as pltpu


def _round_up(x: int, m: int) -> int:
    return pl.cdiv(x, m) * m


def _rmlm_kernel(f_ref, g_ref, rf_ref, rg_ref, o_ref, *, scale, use_bf16):
    # Two MXU matmuls on the current (batch-tile, output-tile) block,
    # then the elementwise product + scaling on the VPU.
    f = f_ref[...]
    g = g_ref[...]
    rf = rf_ref[...]
    rg = rg_ref[...]
    if use_bf16:
        # bf16 operands feed the MXU at full rate on v6e/v7x; accumulation
        # stays f32 via preferred_element_type.
        f = f.astype(jnp.bfloat16)
        g = g.astype(jnp.bfloat16)
        rf = rf.astype(jnp.bfloat16)
        rg = rg.astype(jnp.bfloat16)
    fr = jnp.dot(f, rf, preferred_element_type=jnp.float32)
    gr = jnp.dot(g, rg, preferred_element_type=jnp.float32)
    o_ref[...] = (fr * gr * scale).astype(o_ref.dtype)


def randomized_multi_linear_map(f, g, Rf, Rg, *, tm=None, tn=None,
                                use_bf16=False):
    """out = ((f @ Rf) * (g @ Rg)) / sqrt(output_dim), computed in Pallas."""
    B, F = f.shape
    Bg, C = g.shape
    assert B == Bg
    assert Rf.shape[0] == F and Rg.shape[0] == C
    D = Rf.shape[1]
    assert Rg.shape[1] == D

    scale = 1.0 / math.sqrt(float(D))

    # ---- Tile selection -----------------------------------------------------
    # Batch tile: one big tile for typical CDAN batches (<=256), otherwise 128.
    if tm is None:
        tm = _round_up(B, 8) if B <= 256 else 128
    tm = max(8, _round_up(tm, 8))

    # Output tile: as wide as fits a conservative double-buffered VMEM budget
    # (safe on v7x's 64 MiB VMEM as well as v5e/v6e's 128 MiB).
    d_full = _round_up(D, 128)
    if tn is None:
        budget = 40 * (1 << 20)  # bytes for 2x (all resident tiles), f32
        # 2 * 4 * (tm*(F+C) + tn*(F+C+tm)) <= budget
        tn_max = (budget // 8 - tm * (F + C)) // max(1, (F + C + tm))
        tn = max(128, (tn_max // 128) * 128)
    tn = max(128, _round_up(tn, 128))
    tn = min(tn, d_full)

    # ---- Pad ragged batch / output_dim (zero padding is exact) --------------
    B_pad = _round_up(B, tm)
    D_pad = _round_up(D, tn)
    if B_pad != B:
        f = jnp.pad(f, ((0, B_pad - B), (0, 0)))
        g = jnp.pad(g, ((0, B_pad - B), (0, 0)))
    if D_pad != D:
        Rf = jnp.pad(Rf, ((0, 0), (0, D_pad - D)))
        Rg = jnp.pad(Rg, ((0, 0), (0, D_pad - D)))

    kernel = functools.partial(_rmlm_kernel, scale=scale, use_bf16=use_bf16)

    # Grid: output-dim tiles outermost, batch tiles innermost, so the big
    # Rf/Rg tiles have a constant block index across the inner loop and are
    # fetched from HBM only once per output tile.
    grid = (D_pad // tn, B_pad // tm)

    out = pl.pallas_call(
        kernel,
        out_shape=jax.ShapeDtypeStruct((B_pad, D_pad), jnp.float32),
        grid_spec=pltpu.PrefetchScalarGridSpec(
            num_scalar_prefetch=0,
            grid=grid,
            in_specs=[
                # f tile: (tm, F) — full contraction dim in one block.
                pl.BlockSpec((tm, F), lambda j, i: (i, 0)),
                # g tile: (tm, C)
                pl.BlockSpec((tm, C), lambda j, i: (i, 0)),
                # Rf tile: (F, tn) — constant across the inner batch loop.
                pl.BlockSpec((F, tn), lambda j, i: (0, j)),
                # Rg tile: (C, tn) — constant across the inner batch loop.
                pl.BlockSpec((C, tn), lambda j, i: (0, j)),
            ],
            out_specs=pl.BlockSpec((tm, tn), lambda j, i: (i, j)),
        ),
        compiler_params=pltpu.CompilerParams(
            dimension_semantics=("parallel", "parallel"),
            vmem_limit_bytes=64 * 1024 * 1024,
        ),
    )(f, g, Rf, Rg)

    if B_pad != B or D_pad != D:
        out = out[:B, :D]
    return out


if __name__ == "__main__":
    # Small shapes consistent with the module's forward:
    batch = 8
    features_dim = 32
    num_classes = 8
    output_dim = 256

    key = jax.random.PRNGKey(0)
    kf, kg, krf, krg = jax.random.split(key, 4)

    f = jax.random.normal(kf, (batch, features_dim), dtype=jnp.float32)
    g = jax.nn.softmax(
        jax.random.normal(kg, (batch, num_classes), dtype=jnp.float32), axis=-1
    )
    # Deterministic stand-ins for torch.randn(features_dim, output_dim) etc.
    Rf = jax.random.normal(krf, (features_dim, output_dim), dtype=jnp.float32)
    Rg = jax.random.normal(krg, (num_classes, output_dim), dtype=jnp.float32)

    out = randomized_multi_linear_map(f, g, Rf, Rg)
    out = jax.block_until_ready(out)

    # Pure-JAX reference check (f32 path -> tight tolerance).
    ref = (f @ Rf) * (g @ Rg) / jnp.sqrt(jnp.float32(output_dim))
    assert out.shape == (batch, output_dim)
    assert jnp.allclose(out, ref, atol=1e-4, rtol=1e-4), "mismatch vs reference"

    # Also exercise a ragged-batch config (CDAN-style batch=36) to verify the
    # padding path with large tiles.
    f36 = jax.random.normal(kf, (36, features_dim), dtype=jnp.float32)
    g36 = jax.nn.softmax(
        jax.random.normal(kg, (36, num_classes), dtype=jnp.float32), axis=-1
    )
    out36 = jax.block_until_ready(randomized_multi_linear_map(f36, g36, Rf, Rg))
    ref36 = (f36 @ Rf) * (g36 @ Rg) / jnp.sqrt(jnp.float32(output_dim))
    assert out36.shape == (36, output_dim)
    assert jnp.allclose(out36, ref36, atol=1e-4, rtol=1e-4), "ragged mismatch"

    print("KERNEL_OK")
</pallas_src>

<mosaic_0001>
module attributes {stable_mosaic.version = 11 : i64} {
  func.func @_rmlm_kernel(%arg0: i32, %arg1: i32, %arg2: memref<8x32xf32, #tpu.memory_space<vmem>>, %arg3: memref<8x8xf32, #tpu.memory_space<vmem>>, %arg4: memref<32x256xf32, #tpu.memory_space<vmem>>, %arg5: memref<8x256xf32, #tpu.memory_space<vmem>>, %arg6: memref<8x256xf32, #tpu.memory_space<vmem>>) attributes {dimension_semantics = [#tpu.dimension_semantics<parallel>, #tpu.dimension_semantics<parallel>], iteration_bounds = array<i64: 1, 1>, scalar_prefetch = 0 : i64, scratch_operands = 0 : i64, tpu.core_type = #tpu.core_type<tc>, window_params = [{transform_indices = @transform_0, window_bounds = array<i64: 8, 32>}, {transform_indices = @transform_1, window_bounds = array<i64: 8, 8>}, {transform_indices = @transform_2, window_bounds = array<i64: 32, 256>}, {transform_indices = @transform_3, window_bounds = array<i64: 8, 256>}, {transform_indices = @transform_4, window_bounds = array<i64: 8, 256>}]} {
    %c0 = arith.constant 0 : index
    %c0_0 = arith.constant 0 : index
    %0 = vector.load %arg2[%c0, %c0_0] : memref<8x32xf32, #tpu.memory_space<vmem>>, vector<8x32xf32>
    %c0_1 = arith.constant 0 : index
    %c0_2 = arith.constant 0 : index
    %1 = vector.load %arg3[%c0_1, %c0_2] : memref<8x8xf32, #tpu.memory_space<vmem>>, vector<8x8xf32>
    %c0_3 = arith.constant 0 : index
    %c0_4 = arith.constant 0 : index
    %2 = vector.load %arg4[%c0_3, %c0_4] : memref<32x256xf32, #tpu.memory_space<vmem>>, vector<32x256xf32>
    %c0_5 = arith.constant 0 : index
    %c0_6 = arith.constant 0 : index
    %3 = vector.load %arg5[%c0_5, %c0_6] : memref<8x256xf32, #tpu.memory_space<vmem>>, vector<8x256xf32>
    %cst = arith.constant dense<0.000000e+00> : vector<8x256xf32>
    %4 = tpu.matmul %0, %2, %cst {dimension_numbers = #tpu.dot_dimension_numbers<[1], [0], [0], [1], [0, 0, 1, 1], [], []>} : vector<8x32xf32>, vector<32x256xf32>, vector<8x256xf32> -> vector<8x256xf32>
    %cst_7 = arith.constant dense<0.000000e+00> : vector<8x256xf32>
    %5 = tpu.matmul %1, %3, %cst_7 {dimension_numbers = #tpu.dot_dimension_numbers<[1], [0], [0], [1], [0, 0, 1, 1], [], []>} : vector<8x8xf32>, vector<8x256xf32>, vector<8x256xf32> -> vector<8x256xf32>
    %6 = arith.mulf %4, %5 : vector<8x256xf32>
    %cst_8 = arith.constant 6.250000e-02 : f32
    %7 = vector.broadcast %cst_8 : f32 to vector<8x256xf32>
    %8 = arith.mulf %6, %7 : vector<8x256xf32>
    %c0_9 = arith.constant 0 : index
    %c0_10 = arith.constant 0 : index
    %9 = vector.load %arg6[%c0_9, %c0_10] : memref<8x256xf32, #tpu.memory_space<vmem>>, vector<8x256xf32>
    tpu.vector_store %arg6[%c0_9, %c0_10], %8 {strides = array<i32>} : memref<8x256xf32, #tpu.memory_space<vmem>>, vector<8x256xf32>,
    return
  }
  func.func @transform_0(%arg0: i32, %arg1: i32) -> (i32, i32) {
    %c0_i32 = arith.constant 0 : i32
    %c0_i32_0 = arith.constant 0 : i32
    return %arg1, %c0_i32 : i32, i32
  }
  func.func @transform_1(%arg0: i32, %arg1: i32) -> (i32, i32) {
    %c0_i32 = arith.constant 0 : i32
    %c0_i32_0 = arith.constant 0 : i32
    return %arg1, %c0_i32 : i32, i32
  }
  func.func @transform_2(%arg0: i32, %arg1: i32) -> (i32, i32) {
    %c0_i32 = arith.constant 0 : i32
    %c0_i32_0 = arith.constant 0 : i32
    return %c0_i32, %arg0 : i32, i32
  }
  func.func @transform_3(%arg0: i32, %arg1: i32) -> (i32, i32) {
    %c0_i32 = arith.constant 0 : i32
    %c0_i32_0 = arith.constant 0 : i32
    return %c0_i32, %arg0 : i32, i32
  }
  func.func @transform_4(%arg0: i32, %arg1: i32) -> (i32, i32) {
    %c0_i32 = arith.constant 0 : i32
    return %arg1, %arg0 : i32, i32
  }
}

</mosaic_0001>

<llo_original>
// kernel: tpu_custom_call.1
$region0: #{tpu_custom_call.1}
  #allocation0 [shape = 'u32[]', space=smem, size = 0x4, offset = 0x4, fixed_abs, tag = 'smem constant byte address 0x4 - core index']
  #allocation1 [shape = 'u32[72,128]{1,0:T(1,128)}', space=vmem, size = 0x9000, scoped, tag = 'internal scratch']
  %s0 = inlined_call_operand.hbm [shape: f32[8,32], index: 0, kind: input, shape index: {}]
  %s1 = inlined_call_operand.hbm [shape: f32[8,8], index: 1, kind: input, shape index: {}]
  %s2 = inlined_call_operand.hbm [shape: f32[32,256], index: 2, kind: input, shape index: {}]
  %s3 = inlined_call_operand.hbm [shape: f32[8,256], index: 3, kind: input, shape index: {}]
  %s4 = inlined_call_operand.hbm [shape: f32[8,256], index: 4, kind: output, shape index: {}]
  %s5 = sld [smem:[#allocation0]]
  $region42: #{tpu_custom_call.1} parent=0
    _
  %s7 = ssub.s32 1, %s5
  %s8 = scalar_select 0, %s7, %s5
  $region1: #{tpu_custom_call.1} parent=0
    #allocation2 [shape = 'u8[4096]{0}', space=vmem, size = 0x1000, scoped, tag = 'input window, operand 0, single buffered']
    #allocation3 [shape = 's32[1]{0}', space=sflag, size = 0x4, scoped, tag = 'scoped memory for tpu_custom_call.1']
    #allocation4 [shape = 's32[1]{0}', space=sflag, size = 0x4, scoped, tag = 'scoped memory for tpu_custom_call.1']
    #allocation5 [shape = 'u8[4096]{0}', space=vmem, size = 0x1000, scoped, tag = 'input window, operand 1, single buffered']
    #allocation6 [shape = 's32[1]{0}', space=sflag, size = 0x4, scoped, tag = 'scoped memory for tpu_custom_call.1']
    #allocation7 [shape = 'u8[32768]{0}', space=vmem, size = 0x8000, scoped, tag = 'input window, operand 2, single buffered']
    #allocation8 [shape = 'u8[8192]{0}', space=vmem, size = 0x2000, scoped, tag = 'input window, operand 3, single buffered']
    #allocation9 [shape = 's32[1]{0}', space=sflag, size = 0x4, scoped, tag = 'scoped memory for tpu_custom_call.1']
    #allocation10 [shape = 'u8[8192]{0}', space=vmem, size = 0x2000, scoped, tag = 'output window, operand 0, single buffered']
    %9 = vsyncpa [#allocation3], 0
    %10 = vsyncpa [#allocation6], 0
    %11 = vsyncpa [#allocation9], 0
    %12 = vsyncpa [#allocation4], 0
    // Predicated region
    $region2: #{tpu_custom_call.1} parent=1 // pred_check
      _
    $region3: #{tpu_custom_call.1} parent=1 // pred_check_branch
      %14 = sbr.rel (0) target = $region5
    $region4: #{tpu_custom_call.1} parent=1 // pred_region
      %16 = vsyncadd [#allocation3], 0
      %s18 = sshll.u32 %s0, 4
      %s19 = int_to_ptr.hbm [resolvable:$true] %s18
      %s20 = sshll.u32 [#allocation2], 4
      %s21 = int_to_ptr.vmem [resolvable:$true] %s20
      %23 = dma.hbm_to_vmem [thread:$0]  %s19, 128, %s21, [#allocation3]
    $region5: #{tpu_custom_call.1} parent=1 // pred_fallthru
      _
    // Predicated region
    $region6: #{tpu_custom_call.1} parent=1 // pred_check
      _
    $region7: #{tpu_custom_call.1} parent=1 // pred_check_branch
      %25 = sbr.rel (0) target = $region9
    $region8: #{tpu_custom_call.1} parent=1 // pred_region
      %27 = vsyncadd [#allocation6], 0
      %s29 = sshll.u32 %s1, 4
      %s30 = int_to_ptr.hbm [resolvable:$true] %s29
      %s31 = sshll.u32 [#allocation5], 4
      %s32 = int_to_ptr.vmem [resolvable:$true] %s31
      %34 = dma.hbm_to_vmem [thread:$0]  %s30, 128, %s32, [#allocation6]
    $region9: #{tpu_custom_call.1} parent=1 // pred_fallthru
      _
    // Predicated region
    $region10: #{tpu_custom_call.1} parent=1 // pred_check
      _
    $region11: #{tpu_custom_call.1} parent=1 // pred_check_branch
      %36 = sbr.rel (0) target = $region13
    $region12: #{tpu_custom_call.1} parent=1 // pred_region
      %38 = vsyncadd [#allocation6], 0
      %s39 = sshll.u32 %s2, 4
      %s40 = int_to_ptr.hbm [resolvable:$true] %s39
      %s41 = sshll.u32 [#allocation7], 4
      %s42 = int_to_ptr.vmem [resolvable:$true] %s41
      %47 = dma.hbm_to_vmem [thread:$0]  %s40, 1024, %s42, [#allocation6], 256, 256, 16
    $region13: #{tpu_custom_call.1} parent=1 // pred_fallthru
      _
    // Predicated region
    $region14: #{tpu_custom_call.1} parent=1 // pred_check
      _
    $region15: #{tpu_custom_call.1} parent=1 // pred_check_branch
      %49 = sbr.rel (0) target = $region17
    $region16: #{tpu_custom_call.1} parent=1 // pred_region
      %51 = vsyncadd [#allocation9], 0
      %s53 = sshll.u32 %s3, 4
      %s54 = int_to_ptr.hbm [resolvable:$true] %s53
      %s55 = sshll.u32 [#allocation8], 4
      %s56 = int_to_ptr.vmem [resolvable:$true] %s55
      %58 = dma.hbm_to_vmem [thread:$0]  %s54, 256, %s56, [#allocation9]
    $region17: #{tpu_custom_call.1} parent=1 // pred_fallthru
      _
    // Predicated region
    $region18: #{tpu_custom_call.1} parent=1 // pred_check
      _
    $region19: #{tpu_custom_call.1} parent=1 // pred_check_branch
      %60 = sbr.rel (0) target = $region21
    $region20: #{tpu_custom_call.1} parent=1 // pred_region
      %62 = dma.done [#allocation3], 128
    $region21: #{tpu_custom_call.1} parent=1 // pred_fallthru
      _
    // Predicated region
    $region22: #{tpu_custom_call.1} parent=1 // pred_check
      _
    $region23: #{tpu_custom_call.1} parent=1 // pred_check_branch
      %64 = sbr.rel (0) target = $region25
    $region24: #{tpu_custom_call.1} parent=1 // pred_region
      %66 = dma.done [#allocation6], 128
    $region25: #{tpu_custom_call.1} parent=1 // pred_fallthru
      _
    // Predicated region
    $region26: #{tpu_custom_call.1} parent=1 // pred_check
      _
    $region27: #{tpu_custom_call.1} parent=1 // pred_check_branch
      %68 = sbr.rel (0) target = $region29
    $region28: #{tpu_custom_call.1} parent=1 // pred_region
      %70 = dma.done [#allocation6], 1024
    $region29: #{tpu_custom_call.1} parent=1 // pred_fallthru
      _
    // Predicated region
    $region30: #{tpu_custom_call.1} parent=1 // pred_check
      _
    $region31: #{tpu_custom_call.1} parent=1 // pred_check_branch
      %72 = sbr.rel (0) target = $region33
    $region32: #{tpu_custom_call.1} parent=1 // pred_region
      %74 = dma.done [#allocation9], 256
    $region33: #{tpu_custom_call.1} parent=1 // pred_fallthru
      _
    %v75 = vld [vmem:[#allocation2] sm:$0xff]
    %v76 = vld [vmem:[#allocation5] sm:$0xff]
    %v77 = vld [vmem:[#allocation7] sm:$0xff]
    %v78 = vld [vmem:[#allocation7 + $0x8] sm:$0xff]
    %v79 = vld [vmem:[#allocation7 + $0x10] sm:$0xff]
    %v80 = vld [vmem:[#allocation7 + $0x18] sm:$0xff]
    %v81 = vld [vmem:[#allocation7 + $0x20] sm:$0xff]
    %v82 = vld [vmem:[#allocation7 + $0x28] sm:$0xff]
    %v83 = vld [vmem:[#allocation7 + $0x30] sm:$0xff]
    %v84 = vld [vmem:[#allocation7 + $0x38] sm:$0xff]
    %v85 = vld [vmem:[#allocation8] sm:$0xff]
    %v86 = vld [vmem:[#allocation8 + $0x8] sm:$0xff]
    %vm87 = vcmask 261120
    %v89 = vsel %vm87, %v75, 0
    %91 = vmatpush.msra.mxu0 0.0
    %92 = vmatpush.msra.mxu0 0.0
    %93 = vmatpush.msra.mxu0 0.0
    %94 = vmatpush.msra.mxu0 0.0
    %95 = vmatpush.msra.mxu0 0.0
    %96 = vmatpush.msra.mxu0 0.0
    %97 = vmatpush.msra.mxu0 0.0
    %98 = vmatpush.msra.mxu0 0.0
    %99 = vmatpush.msra.mxu0 0.0
    %100 = vmatpush.msra.mxu0 0.0
    %101 = vmatpush.msra.mxu0 0.0
    %102 = vmatpush.msra.mxu0 0.0
    %103 = vmatpush.msra.mxu0 %v83
    %104 = vmatpush.msra.mxu0 %v81
    %105 = vmatpush.msra.mxu0 %v79
    %106 = vmatpush.msra.mxu0 %v77
    %107 = vmatmul.f32.gmra.mxu0 %v89
    %v108 = vpop.f32.mrf.mxu0
    %v109 = vadd.f32 0.0, %v108
    %110 = vdwg.mxu0
    %111 = vmatpush.msra.mxu0 0.0
    %112 = vmatpush.msra.mxu0 0.0
    %113 = vmatpush.msra.mxu0 0.0
    %114 = vmatpush.msra.mxu0 0.0
    %115 = vmatpush.msra.mxu0 0.0
    %116 = vmatpush.msra.mxu0 0.0
    %117 = vmatpush.msra.mxu0 0.0
    %118 = vmatpush.msra.mxu0 0.0
    %119 = vmatpush.msra.mxu0 0.0
    %120 = vmatpush.msra.mxu0 0.0
    %121 = vmatpush.msra.mxu0 0.0
    %122 = vmatpush.msra.mxu0 0.0
    %123 = vmatpush.msra.mxu0 %v84
    %124 = vmatpush.msra.mxu0 %v82
    %125 = vmatpush.msra.mxu0 %v80
    %126 = vmatpush.msra.mxu0 %v78
    %127 = vmatmul.f32.gmra.mxu0 %v89
    %v128 = vpop.f32.mrf.mxu0
    %v129 = vadd.f32 0.0, %v128
    %130 = vdwg.mxu0
    %vm131 = vcmask 64512
    %v133 = vsel %vm131, %v76, 0
    %135 = vmatpush.msra.mxu0 0.0
    %136 = vmatpush.msra.mxu0 0.0
    %137 = vmatpush.msra.mxu0 0.0
    %138 = vmatpush.msra.mxu0 0.0
    %139 = vmatpush.msra.mxu0 0.0
    %140 = vmatpush.msra.mxu0 0.0
    %141 = vmatpush.msra.mxu0 0.0
    %142 = vmatpush.msra.mxu0 0.0
    %143 = vmatpush.msra.mxu0 0.0
    %144 = vmatpush.msra.mxu0 0.0
    %145 = vmatpush.msra.mxu0 0.0
    %146 = vmatpush.msra.mxu0 0.0
    %147 = vmatpush.msra.mxu0 0.0
    %148 = vmatpush.msra.mxu0 0.0
    %149 = vmatpush.msra.mxu0 0.0
    %150 = vmatpush.msra.mxu0 %v85
    %151 = vmatmul.f32.gmra.mxu0 %v133
    %v152 = vpop.f32.mrf.mxu0
    %v153 = vadd.f32 0.0, %v152
    %154 = vdwg.mxu0
    %155 = vmatpush.msra.mxu0 0.0
    %156 = vmatpush.msra.mxu0 0.0
    %157 = vmatpush.msra.mxu0 0.0
    %158 = vmatpush.msra.mxu0 0.0
    %159 = vmatpush.msra.mxu0 0.0
    %160 = vmatpush.msra.mxu0 0.0
    %161 = vmatpush.msra.mxu0 0.0
    %162 = vmatpush.msra.mxu0 0.0
    %163 = vmatpush.msra.mxu0 0.0
    %164 = vmatpush.msra.mxu0 0.0
    %165 = vmatpush.msra.mxu0 0.0
    %166 = vmatpush.msra.mxu0 0.0
    %167 = vmatpush.msra.mxu0 0.0
    %168 = vmatpush.msra.mxu0 0.0
    %169 = vmatpush.msra.mxu0 0.0
    %170 = vmatpush.msra.mxu0 %v86
    %171 = vmatmul.f32.gmra.mxu0 %v133
    %v172 = vpop.f32.mrf.mxu0
    %v173 = vadd.f32 0.0, %v172
    %174 = vdwg.mxu0
    %v175 = vmul.f32 %v109, %v153
    %v176 = vmul.f32 %v129, %v173
    %v177 = vmul.f32 %v175, 0.0625
    %v178 = vmul.f32 %v176, 0.0625
    %179 = vst [vmem:[#allocation10] sm:$0xff] %v177
    %180 = vst [vmem:[#allocation10 + $0x8] sm:$0xff] %v178
    // Predicated region
    $region34: #{tpu_custom_call.1} parent=1 // pred_check
      _
    $region35: #{tpu_custom_call.1} parent=1 // pred_check_branch
      %182 = sbr.rel (0) target = $region37
    $region36: #{tpu_custom_call.1} parent=1 // pred_region
      %184 = vsyncadd [#allocation4], 0
      %s186 = sshll.u32 [#allocation10], 4
      %s187 = int_to_ptr.vmem [resolvable:$true] %s186
      %s188 = sshll.u32 %s4, 4
      %s189 = int_to_ptr.hbm [resolvable:$true] %s188
      %191 = dma.vmem_to_hbm [thread:$0]  %s187, 256, %s189, [#allocation4]
    $region37: #{tpu_custom_call.1} parent=1 // pred_fallthru
      _
    // Predicated region
    $region38: #{tpu_custom_call.1} parent=1 // pred_check
      _
    $region39: #{tpu_custom_call.1} parent=1 // pred_check_branch
      %193 = sbr.rel (0) target = $region41
    $region40: #{tpu_custom_call.1} parent=1 // pred_region
      %195 = dma.done [#allocation4], 256
    $region41: #{tpu_custom_call.1} parent=1 // pred_fallthru
      _
    %196 = vsyncpa [#allocation3], 1
    %197 = vsyncpa [#allocation6], 1
    %198 = vsyncpa [#allocation9], 1
    %199 = vsyncpa [#allocation4], 1

</llo_original>
